<compile_context>
chip_gen: v7x
topology: tpu7x:2x2x1
jax: 0.10.0
libtpu: 0.0.40
codegen_flags: <defaults>
</compile_context>

<pallas_src>
import jax
import jax.numpy as jnp
from jax.experimental import pallas as pl
from jax.experimental.pallas import tpu as pltpu

HP = 128  # lane width of one layer's packed activations (one full vreg lane tile)


# ----------------------------- Pallas kernel --------------------------------
def encoder_kernel(a_ref, x_ref, p_ref, w1_ref, b1_ref, w2_ref, b2_ref,
                   gamma_ref, beta_ref, z_ref, g_ref):
    # a_ref  : [N, N]       bf16  (A + I), shared by both augmentation branches
    # x_ref  : [N, HP]      bf16  lane-packed input: lanes [0,F)=x, [F,2F)=masked x
    # p_ref  : [G, N]       bf16  one-hot graph membership (global_add_pool)
    # w1/w2  : [L, HP, HP]  bf16  block-diagonal packed MLP weights (branch0 | branch1)
    # b1/b2/gamma/beta : [L, 1, HP] f32, duplicated into both branches' lanes
    # z_ref  : [N, L*HP]    f32   per-layer lane-packed node embeddings
    # g_ref  : [G, L*HP]    f32   per-layer lane-packed pooled graph embeddings
    num_layers = w1_ref.shape[0]
    hp = w1_ref.shape[2]

    a_bf = a_ref[...]
    pool = p_ref[...]
    h = x_ref[...]                       # bf16 [N, HP], both branches lane-packed

    for layer in range(num_layers):      # tiny L -> unrolled at trace time
        w1 = w1_ref[layer]
        w2 = w2_ref[layer]
        b1 = b1_ref[layer]
        b2 = b2_ref[layer]
        gamma = gamma_ref[layer]
        beta = beta_ref[layer]

        # GIN aggregation (eps = 0): (A + I) @ h -- ONE matmul covers both branches.
        agg = jnp.dot(a_bf, h, preferred_element_type=jnp.float32).astype(jnp.bfloat16)

        # MLP: Linear -> ReLU -> Linear, then the post-conv ReLU.  Block-diagonal
        # weights keep branch 0 in lanes [0,H) and branch 1 in lanes [H,2H).
        hs = jnp.dot(agg, w1, preferred_element_type=jnp.float32) + b1
        hs = jnp.maximum(hs, 0.0).astype(jnp.bfloat16)
        hs = jnp.dot(hs, w2, preferred_element_type=jnp.float32) + b2
        hs = jnp.maximum(hs, 0.0)                                   # f32 [N, HP]

        # BatchNorm1d (training forward: batch stats, biased var, eps=1e-5).
        # Per-column moments over the node axis are automatically per-branch in the
        # packed layout.  Two-pass variance for parity with PyTorch.
        mean = jnp.mean(hs, axis=0, keepdims=True)
        cen = hs - mean
        var = jnp.mean(cen * cen, axis=0, keepdims=True)
        z = cen * jax.lax.rsqrt(var + 1e-5) * gamma + beta

        lo = layer * hp
        z_ref[:, lo:lo + hp] = z                        # 128-lane dense store
        h = z.astype(jnp.bfloat16)                      # next layer's input
        # global_add_pool via one-hot matmul: bf16 operands, f32 accumulation
        # (single MXU pass; exact one-hot, negligible rounding from bf16 z).
        g_ref[:, lo:lo + hp] = jnp.dot(pool, h, preferred_element_type=jnp.float32)


# ------------------------------ JAX glue -------------------------------------
def encoder_forward(x, a_hat, pool, params, feat_mask):
    """Returns (z, g, z1, z2, g1, g2); aug1 = Identity, aug2 = FeatureMasking."""
    n, f = x.shape
    g_num = pool.shape[0]
    num_layers = len(params)
    h_dim = params[0]["w2"].shape[1]
    assert 2 * f <= HP and 2 * h_dim <= HP, "both branches must fit in one lane tile"

    # Lane-pack the two branches into a single 128-lane tile, cast to bf16 for the MXU.
    x_packed = jnp.zeros((n, HP), jnp.float32)
    x_packed = x_packed.at[:, :f].set(x)
    x_packed = x_packed.at[:, f:2 * f].set(x * feat_mask[None, :])
    x_packed = x_packed.astype(jnp.bfloat16)

    def pack_w(w):                         # block-diagonal pack into [HP, HP]
        fin, fout = w.shape
        out = jnp.zeros((HP, HP), jnp.float32)
        out = out.at[:fin, :fout].set(w)                   # branch 0 block
        out = out.at[fin:2 * fin, fout:2 * fout].set(w)    # branch 1 block
        return out

    def pack_v(v):                         # duplicate [1, w] into both branch lanes
        width = v.shape[-1]
        out = jnp.zeros((1, HP), jnp.float32)
        out = out.at[:, :width].set(v)
        out = out.at[:, width:2 * width].set(v)
        return out

    w1s = jnp.stack([pack_w(p["w1"]) for p in params]).astype(jnp.bfloat16)
    w2s = jnp.stack([pack_w(p["w2"]) for p in params]).astype(jnp.bfloat16)
    b1s = jnp.stack([pack_v(p["b1"]) for p in params])
    b2s = jnp.stack([pack_v(p["b2"]) for p in params])
    gms = jnp.stack([pack_v(p["gamma"]) for p in params])
    bts = jnp.stack([pack_v(p["beta"]) for p in params])

    vmem = pl.BlockSpec(memory_space=pltpu.MemorySpace.VMEM)
    out_shape = (
        jax.ShapeDtypeStruct((n, num_layers * HP), jnp.float32),
        jax.ShapeDtypeStruct((g_num, num_layers * HP), jnp.float32),
    )
    flops = 2 * num_layers * (n * n * HP + 2 * n * HP * HP + g_num * n * HP)
    bytes_accessed = (
        a_hat.size * 2 + x_packed.size * 2 + pool.size * 2
        + (w1s.size + w2s.size) * 2
        + (b1s.size + b2s.size + gms.size + bts.size) * 4
        + (n + g_num) * num_layers * HP * 4)

    z_p, g_p = pl.pallas_call(
        encoder_kernel,
        out_shape=out_shape,
        in_specs=[vmem] * 9,
        out_specs=(vmem, vmem),
        compiler_params=pltpu.CompilerParams(vmem_limit_bytes=32 * 1024 * 1024),
        cost_estimate=pl.CostEstimate(flops=flops, transcendentals=0,
                                      bytes_accessed=bytes_accessed),
    )(a_hat.astype(jnp.bfloat16), x_packed, pool.astype(jnp.bfloat16),
      w1s, b1s, w2s, b2s, gms, bts)

    def unpack(y, off):   # extract one branch's true-H columns from each layer block
        return jnp.concatenate(
            [y[:, l * HP + off: l * HP + off + h_dim] for l in range(num_layers)],
            axis=1)

    z = unpack(z_p, 0)
    z2 = unpack(z_p, h_dim)
    g = unpack(g_p, 0)
    g2 = unpack(g_p, h_dim)
    # aug1 = Identity  =>  (z1, g1) == (z, g): no recomputation needed.
    return z, g, z, z2, g, g2


def init_params(key, input_dim, hidden_dim, num_layers):
    params = []
    dims_in = [input_dim] + [hidden_dim] * (num_layers - 1)
    for li in range(num_layers):
        fin = dims_in[li]
        key, k1, k2 = jax.random.split(key, 3)
        s1 = (6.0 / (fin + hidden_dim)) ** 0.5
        s2 = (6.0 / (hidden_dim + hidden_dim)) ** 0.5
        params.append(dict(
            w1=jax.random.uniform(k1, (fin, hidden_dim), jnp.float32, -s1, s1),
            b1=jnp.zeros((1, hidden_dim), jnp.float32),
            w2=jax.random.uniform(k2, (hidden_dim, hidden_dim), jnp.float32, -s2, s2),
            b2=jnp.zeros((1, hidden_dim), jnp.float32),
            gamma=jnp.ones((1, hidden_dim), jnp.float32),
            beta=jnp.zeros((1, hidden_dim), jnp.float32),
        ))
    return params


def build_graph(num_nodes, nodes_per_graph):
    # Deterministic ring graph within each connected component (undirected).
    src, dst = [], []
    for start in range(0, num_nodes, nodes_per_graph):
        for i in range(nodes_per_graph):
            a = start + i
            b = start + (i + 1) % nodes_per_graph
            src += [a, b]
            dst += [b, a]
    edge_index = jnp.array([src, dst], dtype=jnp.int32)            # [2, E]
    batch = jnp.array([i // nodes_per_graph for i in range(num_nodes)],
                      dtype=jnp.int32)                              # [N]
    adj = jnp.zeros((num_nodes, num_nodes), jnp.float32)
    adj = adj.at[edge_index[1], edge_index[0]].add(1.0)             # dst aggregates src
    a_hat = adj + jnp.eye(num_nodes, dtype=jnp.float32)             # (A + I), eps = 0
    num_graphs = num_nodes // nodes_per_graph
    pool = (batch[None, :] == jnp.arange(num_graphs)[:, None]).astype(jnp.float32)
    return edge_index, batch, a_hat, pool


if __name__ == "__main__":
    N, F, H, L = 16, 8, 32, 2          # nodes, input feat, hidden, GIN layers
    nodes_per_graph = 8

    key = jax.random.PRNGKey(0)
    key, kx = jax.random.split(key)
    x = jax.random.normal(kx, (N, F), jnp.float32)

    edge_index, batch, a_hat, pool = build_graph(N, nodes_per_graph)
    params = init_params(key, F, H, L)
    # deterministic feature mask (pf = 0.25): zero every 4th feature column
    feat_mask = (jnp.arange(F) % 4 != 3).astype(jnp.float32)

    fwd = jax.jit(encoder_forward)
    z, g, z1, z2, g1, g2 = fwd(x, a_hat, pool, params, feat_mask)
    for out in (z, g, z1, z2, g1, g2):
        jax.block_until_ready(out)

    G = N // nodes_per_graph
    assert z.shape == (N, H * L) and g.shape == (G, H * L)
    assert z1.shape == z.shape and z2.shape == z.shape
    assert g1.shape == g.shape and g2.shape == g.shape
    assert bool(jnp.all(jnp.isfinite(z))) and bool(jnp.all(jnp.isfinite(g)))
    assert bool(jnp.all(jnp.isfinite(z2))) and bool(jnp.all(jnp.isfinite(g2)))
    print("KERNEL_OK")
</pallas_src>

<mosaic_0001>
module attributes {stable_mosaic.version = 11 : i64} {
  func.func @encoder_kernel(%arg0: memref<16x16xbf16, #tpu.memory_space<vmem>>, %arg1: memref<16x128xbf16, #tpu.memory_space<vmem>>, %arg2: memref<2x16xbf16, #tpu.memory_space<vmem>>, %arg3: memref<2x128x128xbf16, #tpu.memory_space<vmem>>, %arg4: memref<2x1x128xf32, #tpu.memory_space<vmem>>, %arg5: memref<2x128x128xbf16, #tpu.memory_space<vmem>>, %arg6: memref<2x1x128xf32, #tpu.memory_space<vmem>>, %arg7: memref<2x1x128xf32, #tpu.memory_space<vmem>>, %arg8: memref<2x1x128xf32, #tpu.memory_space<vmem>>, %arg9: memref<16x256xf32, #tpu.memory_space<vmem>>, %arg10: memref<2x256xf32, #tpu.memory_space<vmem>>) attributes {dimension_semantics = [], scalar_prefetch = 0 : i64, scratch_operands = 0 : i64, tpu.core_type = #tpu.core_type<tc>} {
    %c0 = arith.constant 0 : index
    %c0_0 = arith.constant 0 : index
    %0 = vector.load %arg0[%c0, %c0_0] : memref<16x16xbf16, #tpu.memory_space<vmem>>, vector<16x16xbf16>
    %c0_1 = arith.constant 0 : index
    %c0_2 = arith.constant 0 : index
    %1 = vector.load %arg2[%c0_1, %c0_2] : memref<2x16xbf16, #tpu.memory_space<vmem>>, vector<2x16xbf16>
    %c0_3 = arith.constant 0 : index
    %c0_4 = arith.constant 0 : index
    %2 = vector.load %arg1[%c0_3, %c0_4] : memref<16x128xbf16, #tpu.memory_space<vmem>>, vector<16x128xbf16>
    %c0_5 = arith.constant 0 : index
    %c0_6 = arith.constant 0 : index
    %c0_7 = arith.constant 0 : index
    %3 = vector.load %arg3[%c0_5, %c0_6, %c0_7] : memref<2x128x128xbf16, #tpu.memory_space<vmem>>, vector<1x128x128xbf16>
    %4 = vector.shape_cast %3 : vector<1x128x128xbf16> to vector<128x128xbf16>
    %c0_8 = arith.constant 0 : index
    %c0_9 = arith.constant 0 : index
    %c0_10 = arith.constant 0 : index
    %5 = vector.load %arg5[%c0_8, %c0_9, %c0_10] : memref<2x128x128xbf16, #tpu.memory_space<vmem>>, vector<1x128x128xbf16>
    %6 = vector.shape_cast %5 : vector<1x128x128xbf16> to vector<128x128xbf16>
    %c0_11 = arith.constant 0 : index
    %c0_12 = arith.constant 0 : index
    %c0_13 = arith.constant 0 : index
    %7 = vector.load %arg4[%c0_11, %c0_12, %c0_13] : memref<2x1x128xf32, #tpu.memory_space<vmem>>, vector<1x1x128xf32>
    %8 = vector.shape_cast %7 : vector<1x1x128xf32> to vector<1x128xf32>
    %c0_14 = arith.constant 0 : index
    %c0_15 = arith.constant 0 : index
    %c0_16 = arith.constant 0 : index
    %9 = vector.load %arg6[%c0_14, %c0_15, %c0_16] : memref<2x1x128xf32, #tpu.memory_space<vmem>>, vector<1x1x128xf32>
    %10 = vector.shape_cast %9 : vector<1x1x128xf32> to vector<1x128xf32>
    %c0_17 = arith.constant 0 : index
    %c0_18 = arith.constant 0 : index
    %c0_19 = arith.constant 0 : index
    %11 = vector.load %arg7[%c0_17, %c0_18, %c0_19] : memref<2x1x128xf32, #tpu.memory_space<vmem>>, vector<1x1x128xf32>
    %12 = vector.shape_cast %11 : vector<1x1x128xf32> to vector<1x128xf32>
    %c0_20 = arith.constant 0 : index
    %c0_21 = arith.constant 0 : index
    %c0_22 = arith.constant 0 : index
    %13 = vector.load %arg8[%c0_20, %c0_21, %c0_22] : memref<2x1x128xf32, #tpu.memory_space<vmem>>, vector<1x1x128xf32>
    %14 = vector.shape_cast %13 : vector<1x1x128xf32> to vector<1x128xf32>
    %cst = arith.constant dense<0.000000e+00> : vector<16x128xf32>
    %15 = tpu.matmul %0, %2, %cst {dimension_numbers = #tpu.dot_dimension_numbers<[1], [0], [0], [1], [0, 0, 1, 1], [], []>} : vector<16x16xbf16>, vector<16x128xbf16>, vector<16x128xf32> -> vector<16x128xf32>
    %16 = arith.truncf %15 : vector<16x128xf32> to vector<16x128xbf16>
    %cst_23 = arith.constant dense<0.000000e+00> : vector<16x128xf32>
    %17 = tpu.matmul %16, %4, %cst_23 {dimension_numbers = #tpu.dot_dimension_numbers<[1], [0], [0], [1], [0, 0, 1, 1], [], []>} : vector<16x128xbf16>, vector<128x128xbf16>, vector<16x128xf32> -> vector<16x128xf32>
    %18 = vector.broadcast %8 : vector<1x128xf32> to vector<16x128xf32>
    %19 = arith.addf %17, %18 : vector<16x128xf32>
    %cst_24 = arith.constant 0.000000e+00 : f32
    %20 = vector.broadcast %cst_24 : f32 to vector<16x128xf32>
    %21 = arith.maximumf %19, %20 : vector<16x128xf32>
    %22 = arith.truncf %21 : vector<16x128xf32> to vector<16x128xbf16>
    %cst_25 = arith.constant dense<0.000000e+00> : vector<16x128xf32>
    %23 = tpu.matmul %22, %6, %cst_25 {dimension_numbers = #tpu.dot_dimension_numbers<[1], [0], [0], [1], [0, 0, 1, 1], [], []>} : vector<16x128xbf16>, vector<128x128xbf16>, vector<16x128xf32> -> vector<16x128xf32>
    %24 = vector.broadcast %10 : vector<1x128xf32> to vector<16x128xf32>
    %25 = arith.addf %23, %24 : vector<16x128xf32>
    %cst_26 = arith.constant 0.000000e+00 : f32
    %26 = vector.broadcast %cst_26 : f32 to vector<16x128xf32>
    %27 = arith.maximumf %25, %26 : vector<16x128xf32>
    %cst_27 = arith.constant dense<0.000000e+00> : vector<128xf32>
    %28 = vector.multi_reduction <add>, %27, %cst_27 [0] : vector<16x128xf32> to vector<128xf32>
    %29 = vector.shape_cast %28 : vector<128xf32> to vector<1x128xf32>
    %cst_28 = arith.constant 1.600000e+01 : f32
    %30 = vector.broadcast %cst_28 : f32 to vector<1x128xf32>
    %31 = arith.divf %29, %30 : vector<1x128xf32>
    %32 = vector.broadcast %31 : vector<1x128xf32> to vector<16x128xf32>
    %33 = arith.subf %27, %32 : vector<16x128xf32>
    %34 = arith.mulf %33, %33 : vector<16x128xf32>
    %cst_29 = arith.constant dense<0.000000e+00> : vector<128xf32>
    %35 = vector.multi_reduction <add>, %34, %cst_29 [0] : vector<16x128xf32> to vector<128xf32>
    %36 = vector.shape_cast %35 : vector<128xf32> to vector<1x128xf32>
    %cst_30 = arith.constant 1.600000e+01 : f32
    %37 = vector.broadcast %cst_30 : f32 to vector<1x128xf32>
    %38 = arith.divf %36, %37 : vector<1x128xf32>
    %cst_31 = arith.constant 9.99999974E-6 : f32
    %39 = vector.broadcast %cst_31 : f32 to vector<1x128xf32>
    %40 = arith.addf %38, %39 : vector<1x128xf32>
    %41 = math.rsqrt %40 : vector<1x128xf32>
    %42 = vector.broadcast %41 : vector<1x128xf32> to vector<16x128xf32>
    %43 = arith.mulf %33, %42 : vector<16x128xf32>
    %44 = vector.broadcast %12 : vector<1x128xf32> to vector<16x128xf32>
    %45 = arith.mulf %43, %44 : vector<16x128xf32>
    %46 = vector.broadcast %14 : vector<1x128xf32> to vector<16x128xf32>
    %47 = arith.addf %45, %46 : vector<16x128xf32>
    %c0_32 = arith.constant 0 : index
    %c0_33 = arith.constant 0 : index
    %48 = vector.load %arg9[%c0_32, %c0_33] : memref<16x256xf32, #tpu.memory_space<vmem>>, vector<16x128xf32>
    tpu.vector_store %arg9[%c0_32, %c0_33], %47 {strides = array<i32>} : memref<16x256xf32, #tpu.memory_space<vmem>>, vector<16x128xf32>,
    %49 = arith.truncf %47 : vector<16x128xf32> to vector<16x128xbf16>
    %cst_34 = arith.constant dense<0.000000e+00> : vector<2x128xf32>
    %50 = tpu.matmul %1, %49, %cst_34 {dimension_numbers = #tpu.dot_dimension_numbers<[1], [0], [0], [1], [0, 0, 1, 1], [], []>} : vector<2x16xbf16>, vector<16x128xbf16>, vector<2x128xf32> -> vector<2x128xf32>
    %c0_35 = arith.constant 0 : index
    %c0_36 = arith.constant 0 : index
    %51 = vector.load %arg10[%c0_35, %c0_36] : memref<2x256xf32, #tpu.memory_space<vmem>>, vector<2x128xf32>
    tpu.vector_store %arg10[%c0_35, %c0_36], %50 {strides = array<i32>} : memref<2x256xf32, #tpu.memory_space<vmem>>, vector<2x128xf32>,
    %c1 = arith.constant 1 : index
    %c0_37 = arith.constant 0 : index
    %c0_38 = arith.constant 0 : index
    %52 = vector.load %arg3[%c1, %c0_37, %c0_38] : memref<2x128x128xbf16, #tpu.memory_space<vmem>>, vector<1x128x128xbf16>
    %53 = vector.shape_cast %52 : vector<1x128x128xbf16> to vector<128x128xbf16>
    %c1_39 = arith.constant 1 : index
    %c0_40 = arith.constant 0 : index
    %c0_41 = arith.constant 0 : index
    %54 = vector.load %arg5[%c1_39, %c0_40, %c0_41] : memref<2x128x128xbf16, #tpu.memory_space<vmem>>, vector<1x128x128xbf16>
    %55 = vector.shape_cast %54 : vector<1x128x128xbf16> to vector<128x128xbf16>
    %c1_42 = arith.constant 1 : index
    %c0_43 = arith.constant 0 : index
    %c0_44 = arith.constant 0 : index
    %56 = vector.load %arg4[%c1_42, %c0_43, %c0_44] : memref<2x1x128xf32, #tpu.memory_space<vmem>>, vector<1x1x128xf32>
    %57 = vector.shape_cast %56 : vector<1x1x128xf32> to vector<1x128xf32>
    %c1_45 = arith.constant 1 : index
    %c0_46 = arith.constant 0 : index
    %c0_47 = arith.constant 0 : index
    %58 = vector.load %arg6[%c1_45, %c0_46, %c0_47] : memref<2x1x128xf32, #tpu.memory_space<vmem>>, vector<1x1x128xf32>
    %59 = vector.shape_cast %58 : vector<1x1x128xf32> to vector<1x128xf32>
    %c1_48 = arith.constant 1 : index
    %c0_49 = arith.constant 0 : index
    %c0_50 = arith.constant 0 : index
    %60 = vector.load %arg7[%c1_48, %c0_49, %c0_50] : memref<2x1x128xf32, #tpu.memory_space<vmem>>, vector<1x1x128xf32>
    %61 = vector.shape_cast %60 : vector<1x1x128xf32> to vector<1x128xf32>
    %c1_51 = arith.constant 1 : index
    %c0_52 = arith.constant 0 : index
    %c0_53 = arith.constant 0 : index
    %62 = vector.load %arg8[%c1_51, %c0_52, %c0_53] : memref<2x1x128xf32, #tpu.memory_space<vmem>>, vector<1x1x128xf32>
    %63 = vector.shape_cast %62 : vector<1x1x128xf32> to vector<1x128xf32>
    %cst_54 = arith.constant dense<0.000000e+00> : vector<16x128xf32>
    %64 = tpu.matmul %0, %49, %cst_54 {dimension_numbers = #tpu.dot_dimension_numbers<[1], [0], [0], [1], [0, 0, 1, 1], [], []>} : vector<16x16xbf16>, vector<16x128xbf16>, vector<16x128xf32> -> vector<16x128xf32>
    %65 = arith.truncf %64 : vector<16x128xf32> to vector<16x128xbf16>
    %cst_55 = arith.constant dense<0.000000e+00> : vector<16x128xf32>
    %66 = tpu.matmul %65, %53, %cst_55 {dimension_numbers = #tpu.dot_dimension_numbers<[1], [0], [0], [1], [0, 0, 1, 1], [], []>} : vector<16x128xbf16>, vector<128x128xbf16>, vector<16x128xf32> -> vector<16x128xf32>
    %67 = vector.broadcast %57 : vector<1x128xf32> to vector<16x128xf32>
    %68 = arith.addf %66, %67 : vector<16x128xf32>
    %cst_56 = arith.constant 0.000000e+00 : f32
    %69 = vector.broadcast %cst_56 : f32 to vector<16x128xf32>
    %70 = arith.maximumf %68, %69 : vector<16x128xf32>
    %71 = arith.truncf %70 : vector<16x128xf32> to vector<16x128xbf16>
    %cst_57 = arith.constant dense<0.000000e+00> : vector<16x128xf32>
    %72 = tpu.matmul %71, %55, %cst_57 {dimension_numbers = #tpu.dot_dimension_numbers<[1], [0], [0], [1], [0, 0, 1, 1], [], []>} : vector<16x128xbf16>, vector<128x128xbf16>, vector<16x128xf32> -> vector<16x128xf32>
    %73 = vector.broadcast %59 : vector<1x128xf32> to vector<16x128xf32>
    %74 = arith.addf %72, %73 : vector<16x128xf32>
    %cst_58 = arith.constant 0.000000e+00 : f32
    %75 = vector.broadcast %cst_58 : f32 to vector<16x128xf32>
    %76 = arith.maximumf %74, %75 : vector<16x128xf32>
    %cst_59 = arith.constant dense<0.000000e+00> : vector<128xf32>
    %77 = vector.multi_reduction <add>, %76, %cst_59 [0] : vector<16x128xf32> to vector<128xf32>
    %78 = vector.shape_cast %77 : vector<128xf32> to vector<1x128xf32>
    %cst_60 = arith.constant 1.600000e+01 : f32
    %79 = vector.broadcast %cst_60 : f32 to vector<1x128xf32>
    %80 = arith.divf %78, %79 : vector<1x128xf32>
    %81 = vector.broadcast %80 : vector<1x128xf32> to vector<16x128xf32>
    %82 = arith.subf %76, %81 : vector<16x128xf32>
    %83 = arith.mulf %82, %82 : vector<16x128xf32>
    %cst_61 = arith.constant dense<0.000000e+00> : vector<128xf32>
    %84 = vector.multi_reduction <add>, %83, %cst_61 [0] : vector<16x128xf32> to vector<128xf32>
    %85 = vector.shape_cast %84 : vector<128xf32> to vector<1x128xf32>
    %cst_62 = arith.constant 1.600000e+01 : f32
    %86 = vector.broadcast %cst_62 : f32 to vector<1x128xf32>
    %87 = arith.divf %85, %86 : vector<1x128xf32>
    %cst_63 = arith.constant 9.99999974E-6 : f32
    %88 = vector.broadcast %cst_63 : f32 to vector<1x128xf32>
    %89 = arith.addf %87, %88 : vector<1x128xf32>
    %90 = math.rsqrt %89 : vector<1x128xf32>
    %91 = vector.broadcast %90 : vector<1x128xf32> to vector<16x128xf32>
    %92 = arith.mulf %82, %91 : vector<16x128xf32>
    %93 = vector.broadcast %61 : vector<1x128xf32> to vector<16x128xf32>
    %94 = arith.mulf %92, %93 : vector<16x128xf32>
    %95 = vector.broadcast %63 : vector<1x128xf32> to vector<16x128xf32>
    %96 = arith.addf %94, %95 : vector<16x128xf32>
    %c0_64 = arith.constant 0 : index
    %c128 = arith.constant 128 : index
    %97 = vector.load %arg9[%c0_64, %c128] : memref<16x256xf32, #tpu.memory_space<vmem>>, vector<16x128xf32>
    tpu.vector_store %arg9[%c0_64, %c128], %96 {strides = array<i32>} : memref<16x256xf32, #tpu.memory_space<vmem>>, vector<16x128xf32>,
    %98 = arith.truncf %96 : vector<16x128xf32> to vector<16x128xbf16>
    %cst_65 = arith.constant dense<0.000000e+00> : vector<2x128xf32>
    %99 = tpu.matmul %1, %98, %cst_65 {dimension_numbers = #tpu.dot_dimension_numbers<[1], [0], [0], [1], [0, 0, 1, 1], [], []>} : vector<2x16xbf16>, vector<16x128xbf16>, vector<2x128xf32> -> vector<2x128xf32>
    %c0_66 = arith.constant 0 : index
    %c128_67 = arith.constant 128 : index
    %100 = vector.load %arg10[%c0_66, %c128_67] : memref<2x256xf32, #tpu.memory_space<vmem>>, vector<2x128xf32>
    tpu.vector_store %arg10[%c0_66, %c128_67], %99 {strides = array<i32>} : memref<2x256xf32, #tpu.memory_space<vmem>>, vector<2x128xf32>,
    return
  }
}

</mosaic_0001>

<llo_original>
// kernel: encoder_forward.1
$region0: #{encoder_forward.1}
  #allocation0 [shape = 'u32[]', space=smem, size = 0x4, offset = 0x4, fixed_abs, tag = 'smem constant byte address 0x4 - core index']
  #allocation1 [shape = 'u32[144,128]{1,0:T(1,128)}', space=vmem, size = 0x12000, scoped, tag = 'internal scratch']
  %s0 = inlined_call_operand.vmem [shape: bf16[16,16], index: 0, kind: input, shape index: {}]
  %s1 = inlined_call_operand.vmem [shape: bf16[16,128], index: 1, kind: input, shape index: {}]
  %s2 = inlined_call_operand.vmem [shape: bf16[2,16], index: 2, kind: input, shape index: {}]
  %s3 = inlined_call_operand.vmem [shape: bf16[2,128,128], index: 3, kind: input, shape index: {}]
  %s4 = inlined_call_operand.vmem [shape: f32[2,1,128], index: 4, kind: input, shape index: {}]
  %s5 = inlined_call_operand.vmem [shape: bf16[2,128,128], index: 5, kind: input, shape index: {}]
  %s6 = inlined_call_operand.vmem [shape: f32[2,1,128], index: 6, kind: input, shape index: {}]
  %s7 = inlined_call_operand.vmem [shape: f32[2,1,128], index: 7, kind: input, shape index: {}]
  %s8 = inlined_call_operand.vmem [shape: f32[2,1,128], index: 8, kind: input, shape index: {}]
  %s9 = inlined_call_operand.vmem [shape: f32[16,256], index: 9, kind: output, shape index: {0}]
  %s10 = inlined_call_operand.vmem [shape: f32[2,256], index: 10, kind: output, shape index: {1}]
  %11 = xla_tuple %s9, %s10
  %s12 = sld [smem:[#allocation0]]
  $region54: #{encoder_forward.1} parent=0
    _
  %s14 = ssub.s32 1, %s12
  %s15 = scalar_select 0, %s14, %s12
  // Predicated region
  $region2: #{encoder_forward.1} parent=0 // pred_check
    _
  $region3: #{encoder_forward.1} parent=0 // pred_check_branch
    %17 = sbr.rel (0) target = $region5
  $region4: #{encoder_forward.1} parent=0 // pred_region
    _
  $region5: #{encoder_forward.1} parent=0 // pred_fallthru
    _
  // Predicated region
  $region6: #{encoder_forward.1} parent=0 // pred_check
    _
  $region7: #{encoder_forward.1} parent=0 // pred_check_branch
    %19 = sbr.rel (0) target = $region9
  $region8: #{encoder_forward.1} parent=0 // pred_region
    _
  $region9: #{encoder_forward.1} parent=0 // pred_fallthru
    _
  // Predicated region
  $region10: #{encoder_forward.1} parent=0 // pred_check
    _
  $region11: #{encoder_forward.1} parent=0 // pred_check_branch
    %21 = sbr.rel (0) target = $region13
  $region12: #{encoder_forward.1} parent=0 // pred_region
    _
  $region13: #{encoder_forward.1} parent=0 // pred_fallthru
    _
  // Predicated region
  $region14: #{encoder_forward.1} parent=0 // pred_check
    _
  $region15: #{encoder_forward.1} parent=0 // pred_check_branch
    %23 = sbr.rel (0) target = $region17
  $region16: #{encoder_forward.1} parent=0 // pred_region
    _
  $region17: #{encoder_forward.1} parent=0 // pred_fallthru
    _
  // Predicated region
  $region18: #{encoder_forward.1} parent=0 // pred_check
    _
  $region19: #{encoder_forward.1} parent=0 // pred_check_branch
    %25 = sbr.rel (0) target = $region21
  $region20: #{encoder_forward.1} parent=0 // pred_region
    _
  $region21: #{encoder_forward.1} parent=0 // pred_fallthru
    _
  // Predicated region
  $region22: #{encoder_forward.1} parent=0 // pred_check
    _
  $region23: #{encoder_forward.1} parent=0 // pred_check_branch
    %27 = sbr.rel (0) target = $region25
  $region24: #{encoder_forward.1} parent=0 // pred_region
    _
  $region25: #{encoder_forward.1} parent=0 // pred_fallthru
    _
  // Predicated region
  $region26: #{encoder_forward.1} parent=0 // pred_check
    _
  $region27: #{encoder_forward.1} parent=0 // pred_check_branch
    %29 = sbr.rel (0) target = $region29
  $region28: #{encoder_forward.1} parent=0 // pred_region
    _
  $region29: #{encoder_forward.1} parent=0 // pred_fallthru
    _
  // Predicated region
  $region30: #{encoder_forward.1} parent=0 // pred_check
    _
  $region31: #{encoder_forward.1} parent=0 // pred_check_branch
    %31 = sbr.rel (0) target = $region33
  $region32: #{encoder_forward.1} parent=0 // pred_region
    _
  $region33: #{encoder_forward.1} parent=0 // pred_fallthru
    _
  // Predicated region
  $region34: #{encoder_forward.1} parent=0 // pred_check
    _
  $region35: #{encoder_forward.1} parent=0 // pred_check_branch
    %33 = sbr.rel (0) target = $region37
  $region36: #{encoder_forward.1} parent=0 // pred_region
    _
  $region37: #{encoder_forward.1} parent=0 // pred_fallthru
    _
  %v35 = vld [vmem:[%s0] sm:$0xf]
  %v36 = vld [vmem:[%s0 + $0x4] sm:$0xf]
  %v37 = vld [vmem:[%s2] sm:$0x1]
  %v38 = vld [vmem:[%s1] sm:$0xf]
  %v39 = vld [vmem:[%s1 + $0x4] sm:$0xf]
  %v40 = vld [vmem:[%s3] sm:$0xf]
  %v41 = vld [vmem:[%s3 + $0x4] sm:$0xf]
  %v42 = vld [vmem:[%s3 + $0x8] sm:$0xf]
  %v43 = vld [vmem:[%s3 + $0xc] sm:$0xf]
  %v44 = vld [vmem:[%s3 + $0x10] sm:$0xf]
  %v45 = vld [vmem:[%s3 + $0x14] sm:$0xf]
  %v46 = vld [vmem:[%s3 + $0x18] sm:$0xf]
  %v47 = vld [vmem:[%s3 + $0x1c] sm:$0xf]
  %v48 = vld [vmem:[%s3 + $0x20] sm:$0xf]
  %v49 = vld [vmem:[%s3 + $0x24] sm:$0xf]
  %v50 = vld [vmem:[%s3 + $0x28] sm:$0xf]
  %v51 = vld [vmem:[%s3 + $0x2c] sm:$0xf]
  %v52 = vld [vmem:[%s3 + $0x30] sm:$0xf]
  %v53 = vld [vmem:[%s3 + $0x34] sm:$0xf]
  %v54 = vld [vmem:[%s3 + $0x38] sm:$0xf]
  %v55 = vld [vmem:[%s3 + $0x3c] sm:$0xf]
  %v56 = vld [vmem:[%s5] sm:$0xf]
  %v57 = vld [vmem:[%s5 + $0x4] sm:$0xf]
  %v58 = vld [vmem:[%s5 + $0x8] sm:$0xf]
  %v59 = vld [vmem:[%s5 + $0xc] sm:$0xf]
  %v60 = vld [vmem:[%s5 + $0x10] sm:$0xf]
  %v61 = vld [vmem:[%s5 + $0x14] sm:$0xf]
  %v62 = vld [vmem:[%s5 + $0x18] sm:$0xf]
  %v63 = vld [vmem:[%s5 + $0x1c] sm:$0xf]
  %v64 = vld [vmem:[%s5 + $0x20] sm:$0xf]
  %v65 = vld [vmem:[%s5 + $0x24] sm:$0xf]
  %v66 = vld [vmem:[%s5 + $0x28] sm:$0xf]
  %v67 = vld [vmem:[%s5 + $0x2c] sm:$0xf]
  %v68 = vld [vmem:[%s5 + $0x30] sm:$0xf]
  %v69 = vld [vmem:[%s5 + $0x34] sm:$0xf]
  %v70 = vld [vmem:[%s5 + $0x38] sm:$0xf]
  %v71 = vld [vmem:[%s5 + $0x3c] sm:$0xf]
  %v72 = vld [vmem:[%s4] sm:$0x1]
  %v73 = vld [vmem:[%s6] sm:$0x1]
  %v74 = vld [vmem:[%s7] sm:$0x1]
  %v75 = vld [vmem:[%s8] sm:$0x1]
  %v78 = vunpack.c.l.b16 %v35
  %v79 = vunpack.c.l.b16 %v36
  %v80 = vpack.c.b16 %v79, %v78
  %v83 = vunpack.c.l.b16 %v38
  %v84 = vunpack.c.l.b16 %v39
  %v85 = vpack.c.b16 %v84, %v83
  %vm87 = vcmask 130048
  %v89 = vsel %vm87, %v80, 0
  %91 = vmatprep.subr.bf16.mxu0 0
  %92 = vmatpush1.bf16.msra.mxu0 %v85
  %93 = vmatprep.subr.bf16.mxu0 0
  %94 = vmatpush1.bf16.msra.mxu0 0
  %95 = vmatprep.subr.bf16.mxu0 0
  %96 = vmatpush1.bf16.msra.mxu0 0
  %97 = vmatprep.subr.bf16.mxu0 0
  %98 = vmatpush1.bf16.msra.mxu0 0
  %99 = vmatprep.subr.bf16.mxu0 0
  %100 = vmatpush1.bf16.msra.mxu0 0
  %101 = vmatprep.subr.bf16.mxu0 0
  %102 = vmatpush1.bf16.msra.mxu0 0
  %103 = vmatprep.subr.bf16.mxu0 0
  %104 = vmatpush1.bf16.msra.mxu0 0
  %105 = vmatprep.subr.bf16.mxu0 0
  %106 = vmatpush1.bf16.msra.mxu0 0
  %107 = vmatprep.subr.bf16.mxu0 0
  %108 = vmatpush1.bf16.msra.mxu0 0
  %109 = vmatprep.subr.bf16.mxu0 0
  %110 = vmatpush1.bf16.msra.mxu0 0
  %111 = vmatprep.subr.bf16.mxu0 0
  %112 = vmatpush1.bf16.msra.mxu0 0
  %113 = vmatprep.subr.bf16.mxu0 0
  %114 = vmatpush1.bf16.msra.mxu0 0
  %115 = vmatprep.subr.bf16.mxu0 0
  %116 = vmatpush1.bf16.msra.mxu0 0
  %117 = vmatprep.subr.bf16.mxu0 0
  %118 = vmatpush1.bf16.msra.mxu0 0
  %119 = vmatprep.subr.bf16.mxu0 0
  %120 = vmatpush1.bf16.msra.mxu0 0
  %121 = vmatprep.subr.bf16.mxu0 0
  %122 = vmatpush1.bf16.msra.mxu0 0
  %123 = vmatprep.mubr.bf16.mxu0 0
  %124 = vmatmul.mubr.bf16.gmra.mrb[0].mxu0 %v89
  %v125 = vpop.f32.mrb[0].mxu0
  %v126 = vadd.f32 0.0, %v125
  %v127 = vpop.f32.mrb[0].mxu0
  %v128 = vpop.f32.mrb[0].mxu0
  %v129 = vadd.f32 0.0, %v128
  %v130 = vpop.f32.mrb[0].mxu0
  %131 = vdwg.mxu0
  %v132 = vpack.c.bf16 %v129, %v126
  %v134 = vlaneseq
  %v135 = vshrl.u32 %v134, 7
  %v136 = vsub.s32 0, %v135
  %v137 = vrot.slane %v72, %v136
  %v155 = vunpack.c.l.b16 %v40
  %v156 = vunpack.c.l.b16 %v41
  %v157 = vunpack.c.l.b16 %v42
  %v158 = vunpack.c.l.b16 %v43
  %v159 = vunpack.c.l.b16 %v44
  %v160 = vunpack.c.l.b16 %v45
  %v161 = vunpack.c.l.b16 %v46
  %v162 = vunpack.c.l.b16 %v47
  %v163 = vunpack.c.l.b16 %v48
  %v164 = vunpack.c.l.b16 %v49
  %v165 = vunpack.c.l.b16 %v50
  %v166 = vunpack.c.l.b16 %v51
  %v167 = vunpack.c.l.b16 %v52
  %v168 = vunpack.c.l.b16 %v53
  %v169 = vunpack.c.l.b16 %v54
  %v170 = vunpack.c.l.b16 %v55
  %v171 = vpack.c.b16 %v156, %v155
  %v172 = vpack.c.b16 %v158, %v157
  %v173 = vpack.c.b16 %v160, %v159
  %v174 = vpack.c.b16 %v162, %v161
  %v175 = vpack.c.b16 %v164, %v163
  %v176 = vpack.c.b16 %v166, %v165
  %v177 = vpack.c.b16 %v168, %v167
  %v178 = vpack.c.b16 %v170, %v169
  %187 = vmatprep.subr.bf16.mxu0 0
  %188 = vmatpush1.bf16.msra.mxu0 %v171
  %189 = vmatprep.subr.bf16.mxu0 0
  %190 = vmatpush1.bf16.msra.mxu0 %v172
  %191 = vmatprep.subr.bf16.mxu0 0
  %192 = vmatpush1.bf16.msra.mxu0 %v173
  %193 = vmatprep.subr.bf16.mxu0 0
  %194 = vmatpush1.bf16.msra.mxu0 %v174
  %195 = vmatprep.subr.bf16.mxu0 0
  %196 = vmatpush1.bf16.msra.mxu0 %v175
  %197 = vmatprep.subr.bf16.mxu0 0
  %198 = vmatpush1.bf16.msra.mxu0 %v176
  %199 = vmatprep.subr.bf16.mxu0 0
  %200 = vmatpush1.bf16.msra.mxu0 %v177
  %201 = vmatprep.subr.bf16.mxu0 0
  %202 = vmatpush1.bf16.msra.mxu0 %v178
  %203 = vmatprep.subr.bf16.mxu0 0
  %204 = vmatpush1.bf16.msra.mxu0 0
  %205 = vmatprep.subr.bf16.mxu0 0
  %206 = vmatpush1.bf16.msra.mxu0 0
  %207 = vmatprep.subr.bf16.mxu0 0
  %208 = vmatpush1.bf16.msra.mxu0 0
  %209 = vmatprep.subr.bf16.mxu0 0
  %210 = vmatpush1.bf16.msra.mxu0 0
  %211 = vmatprep.subr.bf16.mxu0 0
  %212 = vmatpush1.bf16.msra.mxu0 0
  %213 = vmatprep.subr.bf16.mxu0 0
  %214 = vmatpush1.bf16.msra.mxu0 0
  %215 = vmatprep.subr.bf16.mxu0 0
  %216 = vmatpush1.bf16.msra.mxu0 0
  %217 = vmatprep.subr.bf16.mxu0 0
  %218 = vmatpush1.bf16.msra.mxu0 0
  %219 = vmatprep.mubr.bf16.mxu0 0
  %220 = vmatmul.mubr.bf16.gmra.mrb[0].mxu0 %v132
  %v221 = vpop.f32.mrb[0].mxu0
  %v222 = vadd.f32 %v137, %v221
  %v223 = vpop.f32.mrb[0].mxu0
  %v224 = vpop.f32.mrb[0].mxu0
  %v225 = vadd.f32 %v137, %v224
  %v226 = vpop.f32.mrb[0].mxu0
  %227 = vdwg.mxu0
  %v228 = vmax.f32 %v222, 0.0
  %v229 = vmax.f32 %v225, 0.0
  %v230 = vpack.c.bf16 %v229, %v228
  %v232 = vlaneseq
  %v233 = vshrl.u32 %v232, 7
  %v234 = vsub.s32 0, %v233
  %v235 = vrot.slane %v73, %v234
  %v253 = vunpack.c.l.b16 %v56
  %v254 = vunpack.c.l.b16 %v57
  %v255 = vunpack.c.l.b16 %v58
  %v256 = vunpack.c.l.b16 %v59
  %v257 = vunpack.c.l.b16 %v60
  %v258 = vunpack.c.l.b16 %v61
  %v259 = vunpack.c.l.b16 %v62
  %v260 = vunpack.c.l.b16 %v63
  %v261 = vunpack.c.l.b16 %v64
  %v262 = vunpack.c.l.b16 %v65
  %v263 = vunpack.c.l.b16 %v66
  %v264 = vunpack.c.l.b16 %v67
  %v265 = vunpack.c.l.b16 %v68
  %v266 = vunpack.c.l.b16 %v69
  %v267 = vunpack.c.l.b16 %v70
  %v268 = vunpack.c.l.b16 %v71
  %v269 = vpack.c.b16 %v254, %v253
  %v270 = vpack.c.b16 %v256, %v255
  %v271 = vpack.c.b16 %v258, %v257
  %v272 = vpack.c.b16 %v260, %v259
  %v273 = vpack.c.b16 %v262, %v261
  %v274 = vpack.c.b16 %v264, %v263
  %v275 = vpack.c.b16 %v266, %v265
  %v276 = vpack.c.b16 %v268, %v267
  %285 = vmatprep.subr.bf16.mxu0 0
  %286 = vmatpush1.bf16.msra.mxu0 %v269
  %287 = vmatprep.subr.bf16.mxu0 0
  %288 = vmatpush1.bf16.msra.mxu0 %v270
  %289 = vmatprep.subr.bf16.mxu0 0
  %290 = vmatpush1.bf16.msra.mxu0 %v271
  %291 = vmatprep.subr.bf16.mxu0 0
  %292 = vmatpush1.bf16.msra.mxu0 %v272
  %293 = vmatprep.subr.bf16.mxu0 0
  %294 = vmatpush1.bf16.msra.mxu0 %v273
  %295 = vmatprep.subr.bf16.mxu0 0
  %296 = vmatpush1.bf16.msra.mxu0 %v274
  %297 = vmatprep.subr.bf16.mxu0 0
  %298 = vmatpush1.bf16.msra.mxu0 %v275
  %299 = vmatprep.subr.bf16.mxu0 0
  %300 = vmatpush1.bf16.msra.mxu0 %v276
  %301 = vmatprep.subr.bf16.mxu0 0
  %302 = vmatpush1.bf16.msra.mxu0 0
  %303 = vmatprep.subr.bf16.mxu0 0
  %304 = vmatpush1.bf16.msra.mxu0 0
  %305 = vmatprep.subr.bf16.mxu0 0
  %306 = vmatpush1.bf16.msra.mxu0 0
  %307 = vmatprep.subr.bf16.mxu0 0
  %308 = vmatpush1.bf16.msra.mxu0 0
  %309 = vmatprep.subr.bf16.mxu0 0
  %310 = vmatpush1.bf16.msra.mxu0 0
  %311 = vmatprep.subr.bf16.mxu0 0
  %312 = vmatpush1.bf16.msra.mxu0 0
  %313 = vmatprep.subr.bf16.mxu0 0
  %314 = vmatpush1.bf16.msra.mxu0 0
  %315 = vmatprep.subr.bf16.mxu0 0
  %316 = vmatpush1.bf16.msra.mxu0 0
  %317 = vmatprep.mubr.bf16.mxu0 0
  %318 = vmatmul.mubr.bf16.gmra.mrb[0].mxu0 %v230
  %v319 = vpop.f32.mrb[0].mxu0
  %v320 = vadd.f32 %v235, %v319
  %v321 = vpop.f32.mrb[0].mxu0
  %v322 = vpop.f32.mrb[0].mxu0
  %v323 = vadd.f32 %v235, %v322
  %v324 = vpop.f32.mrb[0].mxu0
  %325 = vdwg.mxu0
  %v326 = vmax.f32 %v320, 0.0
  %v327 = vmax.f32 %v323, 0.0
  %v328 = vadd.f32 %v326, %v327
  %v329 = vrot.slane %v328, 4
  %v330 = vadd.f32 %v328, %v329
  %v331 = vrot.slane %v330, 2
  %v332 = vadd.f32 %v330, %v331
  %v333 = vrot.slane %v332, 1
  %v334 = vadd.f32 %v332, %v333
  %v335 = vrcp.pop 16.0
  %v336 = vmul.f32 %v334, %v335
  %v337 = vsub.f32 %v326, %v336
  %v338 = vsub.f32 %v327, %v336
  %v339 = vmul.f32 %v337, %v337
  %v340 = vmul.f32 %v338, %v338
  %v341 = vadd.f32 %v339, %v340
  %v342 = vrot.slane %v341, 4
  %v343 = vadd.f32 %v341, %v342
  %v344 = vrot.slane %v343, 2
  %v345 = vadd.f32 %v343, %v344
  %v346 = vrot.slane %v345, 1
  %v347 = vadd.f32 %v345, %v346
  %v348 = vmul.f32 %v347, %v335
  %v349 = vadd.f32 %v348, 1e-05
  %v350 = vrsqrt.pop %v349
  %v351 = vmul.f32 %v337, %v350
  %v352 = vmul.f32 %v338, %v350
  %v354 = vlaneseq
  %v355 = vshrl.u32 %v354, 7
  %v356 = vsub.s32 0, %v355
  %v357 = vrot.slane %v74, %v356
  %v359 = vmul.f32 %v351, %v357
  %v360 = vmul.f32 %v352, %v357
  %v362 = vlaneseq
  %v363 = vshrl.u32 %v362, 7
  %v364 = vsub.s32 0, %v363
  %v365 = vrot.slane %v75, %v364
  %v367 = vadd.f32 %v359, %v365
  %v368 = vadd.f32 %v360, %v365
  %369 = vst [vmem:[%s9] sm:$0xff] %v367
  %370 = vst [vmem:[%s9 + $0x10] sm:$0xff] %v368
  %v371 = vpack.c.bf16 %v368, %v367
  %v373 = vsel %vm87, %v37, 0
  %375 = vmatprep.subr.bf16.mxu0 0
  %376 = vmatpush1.bf16.msra.mxu0 %v371
  %377 = vmatprep.subr.bf16.mxu0 0
  %378 = vmatpush1.bf16.msra.mxu0 0
  %379 = vmatprep.subr.bf16.mxu0 0
  %380 = vmatpush1.bf16.msra.mxu0 0
  %381 = vmatprep.subr.bf16.mxu0 0
  %382 = vmatpush1.bf16.msra.mxu0 0
  %383 = vmatprep.subr.bf16.mxu0 0
  %384 = vmatpush1.bf16.msra.mxu0 0
  %385 = vmatprep.subr.bf16.mxu0 0
  %386 = vmatpush1.bf16.msra.mxu0 0
  %387 = vmatprep.subr.bf16.mxu0 0
  %388 = vmatpush1.bf16.msra.mxu0 0
  %389 = vmatprep.subr.bf16.mxu0 0
  %390 = vmatpush1.bf16.msra.mxu0 0
  %391 = vmatprep.subr.bf16.mxu0 0
  %392 = vmatpush1.bf16.msra.mxu0 0
  %393 = vmatprep.subr.bf16.mxu0 0
  %394 = vmatpush1.bf16.msra.mxu0 0
  %395 = vmatprep.subr.bf16.mxu0 0
  %396 = vmatpush1.bf16.msra.mxu0 0
  %397 = vmatprep.subr.bf16.mxu0 0
  %398 = vmatpush1.bf16.msra.mxu0 0
  %399 = vmatprep.subr.bf16.mxu0 0
  %400 = vmatpush1.bf16.msra.mxu0 0
  %401 = vmatprep.subr.bf16.mxu0 0
  %402 = vmatpush1.bf16.msra.mxu0 0
  %403 = vmatprep.subr.bf16.mxu0 0
  %404 = vmatpush1.bf16.msra.mxu0 0
  %405 = vmatprep.subr.bf16.mxu0 0
  %406 = vmatpush1.bf16.msra.mxu0 0
  %407 = vmatprep.mubr.bf16.mxu0 0
  %408 = vmatmul.mubr.bf16.gmra.mrb[0].mxu0 %v373
  %v409 = vpop.f32.mrb[0].mxu0
  %v410 = vadd.f32 0.0, %v409
  %v411 = vpop.f32.mrb[0].mxu0
  %v412 = vpop.f32.mrb[0].mxu0
  %v413 = vpop.f32.mrb[0].mxu0
  %414 = vdwg.mxu0
  %415 = vst [vmem:[%s10] sm:$0x3] %v410
  %s416 = scalar_lea.vmem %s3, 64
  %v417 = vld [vmem:[%s416] sm:$0xf]
  %v418 = vld [vmem:[%s416 + $0x4] sm:$0xf]
  %v419 = vld [vmem:[%s416 + $0x8] sm:$0xf]
  %v420 = vld [vmem:[%s416 + $0xc] sm:$0xf]
  %v421 = vld [vmem:[%s416 + $0x10] sm:$0xf]
  %v422 = vld [vmem:[%s416 + $0x14] sm:$0xf]
  %v423 = vld [vmem:[%s416 + $0x18] sm:$0xf]
  %v424 = vld [vmem:[%s416 + $0x1c] sm:$0xf]
  %v425 = vld [vmem:[%s416 + $0x20] sm:$0xf]
  %v426 = vld [vmem:[%s416 + $0x24] sm:$0xf]
  %v427 = vld [vmem:[%s416 + $0x28] sm:$0xf]
  %v428 = vld [vmem:[%s416 + $0x2c] sm:$0xf]
  %v429 = vld [vmem:[%s416 + $0x30] sm:$0xf]
  %v430 = vld [vmem:[%s416 + $0x34] sm:$0xf]
  %v431 = vld [vmem:[%s416 + $0x38] sm:$0xf]
  %v432 = vld [vmem:[%s416 + $0x3c] sm:$0xf]
  %s433 = scalar_lea.vmem %s5, 64
  %v434 = vld [vmem:[%s433] sm:$0xf]
  %v435 = vld [vmem:[%s433 + $0x4] sm:$0xf]
  %v436 = vld [vmem:[%s433 + $0x8] sm:$0xf]
  %v437 = vld [vmem:[%s433 + $0xc] sm:$0xf]
  %v438 = vld [vmem:[%s433 + $0x10] sm:$0xf]
  %v439 = vld [vmem:[%s433 + $0x14] sm:$0xf]
  %v440 = vld [vmem:[%s433 + $0x18] sm:$0xf]
  %v441 = vld [vmem:[%s433 + $0x1c] sm:$0xf]
  %v442 = vld [vmem:[%s433 + $0x20] sm:$0xf]
  %v443 = vld [vmem:[%s433 + $0x24] sm:$0xf]
  %v444 = vld [vmem:[%s433 + $0x28] sm:$0xf]
  %v445 = vld [vmem:[%s433 + $0x2c] sm:$0xf]
  %v446 = vld [vmem:[%s433 + $0x30] sm:$0xf]
  %v447 = vld [vmem:[%s433 + $0x34] sm:$0xf]
  %v448 = vld [vmem:[%s433 + $0x38] sm:$0xf]
  %v449 = vld [vmem:[%s433 + $0x3c] sm:$0xf]
  %s450 = scalar_lea.vmem %s4, 1
  %v451 = vld [vmem:[%s450] sm:$0x1]
  %s452 = scalar_lea.vmem %s6, 1
  %v453 = vld [vmem:[%s452] sm:$0x1]
  %s454 = scalar_lea.vmem %s7, 1
  %v455 = vld [vmem:[%s454] sm:$0x1]
  %s456 = scalar_lea.vmem %s8, 1
  %v457 = vld [vmem:[%s456] sm:$0x1]
  %458 = vmatprep.subr.bf16.mxu0 0
  %459 = vmatpush1.bf16.msra.mxu0 %v371
  %460 = vmatprep.subr.bf16.mxu0 0
  %461 = vmatpush1.bf16.msra.mxu0 0
  %462 = vmatprep.subr.bf16.mxu0 0
  %463 = vmatpush1.bf16.msra.mxu0 0
  %464 = vmatprep.subr.bf16.mxu0 0
  %465 = vmatpush1.bf16.msra.mxu0 0
  %466 = vmatprep.subr.bf16.mxu0 0
  %467 = vmatpush1.bf16.msra.mxu0 0
  %468 = vmatprep.subr.bf16.mxu0 0
  %469 = vmatpush1.bf16.msra.mxu0 0
  %470 = vmatprep.subr.bf16.mxu0 0
  %471 = vmatpush1.bf16.msra.mxu0 0
  %472 = vmatprep.subr.bf16.mxu0 0
  %473 = vmatpush1.bf16.msra.mxu0 0
  %474 = vmatprep.subr.bf16.mxu0 0
  %475 = vmatpush1.bf16.msra.mxu0 0
  %476 = vmatprep.subr.bf16.mxu0 0
  %477 = vmatpush1.bf16.msra.mxu0 0
  %478 = vmatprep.subr.bf16.mxu0 0
  %479 = vmatpush1.bf16.msra.mxu0 0
  %480 = vmatprep.subr.bf16.mxu0 0
  %481 = vmatpush1.bf16.msra.mxu0 0
  %482 = vmatprep.subr.bf16.mxu0 0
  %483 = vmatpush1.bf16.msra.mxu0 0
  %484 = vmatprep.subr.bf16.mxu0 0
  %485 = vmatpush1.bf16.msra.mxu0 0
  %486 = vmatprep.subr.bf16.mxu0 0
  %487 = vmatpush1.bf16.msra.mxu0 0
  %488 = vmatprep.subr.bf16.mxu0 0
  %489 = vmatpush1.bf16.msra.mxu0 0
  %490 = vmatprep.mubr.bf16.mxu0 0
  %491 = vmatmul.mubr.bf16.gmra.mrb[0].mxu0 %v89
  %v492 = vpop.f32.mrb[0].mxu0
  %v493 = vadd.f32 0.0, %v492
  %v494 = vpop.f32.mrb[0].mxu0
  %v495 = vpop.f32.mrb[0].mxu0
  %v496 = vadd.f32 0.0, %v495
  %v497 = vpop.f32.mrb[0].mxu0
  %498 = vdwg.mxu0
  %v499 = vpack.c.bf16 %v496, %v493
  %v501 = vlaneseq
  %v502 = vshrl.u32 %v501, 7
  %v503 = vsub.s32 0, %v502
  %v504 = vrot.slane %v451, %v503
  %v522 = vunpack.c.l.b16 %v417
  %v523 = vunpack.c.l.b16 %v418
  %v524 = vunpack.c.l.b16 %v419
  %v525 = vunpack.c.l.b16 %v420
  %v526 = vunpack.c.l.b16 %v421
  %v527 = vunpack.c.l.b16 %v422
  %v528 = vunpack.c.l.b16 %v423
  %v529 = vunpack.c.l.b16 %v424
  %v530 = vunpack.c.l.b16 %v425
  %v531 = vunpack.c.l.b16 %v426
  %v532 = vunpack.c.l.b16 %v427
  %v533 = vunpack.c.l.b16 %v428
  %v534 = vunpack.c.l.b16 %v429
  %v535 = vunpack.c.l.b16 %v430
  %v536 = vunpack.c.l.b16 %v431
  %v537 = vunpack.c.l.b16 %v432
  %v538 = vpack.c.b16 %v523, %v522
  %v539 = vpack.c.b16 %v525, %v524
  %v540 = vpack.c.b16 %v527, %v526
  %v541 = vpack.c.b16 %v529, %v528
  %v542 = vpack.c.b16 %v531, %v530
  %v543 = vpack.c.b16 %v533, %v532
  %v544 = vpack.c.b16 %v535, %v534
  %v545 = vpack.c.b16 %v537, %v536
  %554 = vmatprep.subr.bf16.mxu0 0
  %555 = vmatpush1.bf16.msra.mxu0 %v538
  %556 = vmatprep.subr.bf16.mxu0 0
  %557 = vmatpush1.bf16.msra.mxu0 %v539
  %558 = vmatprep.subr.bf16.mxu0 0
  %559 = vmatpush1.bf16.msra.mxu0 %v540
  %560 = vmatprep.subr.bf16.mxu0 0
  %561 = vmatpush1.bf16.msra.mxu0 %v541
  %562 = vmatprep.subr.bf16.mxu0 0
  %563 = vmatpush1.bf16.msra.mxu0 %v542
  %564 = vmatprep.subr.bf16.mxu0 0
  %565 = vmatpush1.bf16.msra.mxu0 %v543
  %566 = vmatprep.subr.bf16.mxu0 0
  %567 = vmatpush1.bf16.msra.mxu0 %v544
  %568 = vmatprep.subr.bf16.mxu0 0
  %569 = vmatpush1.bf16.msra.mxu0 %v545
  %570 = vmatprep.subr.bf16.mxu0 0
  %571 = vmatpush1.bf16.msra.mxu0 0
  %572 = vmatprep.subr.bf16.mxu0 0
  %573 = vmatpush1.bf16.msra.mxu0 0
  %574 = vmatprep.subr.bf16.mxu0 0
  %575 = vmatpush1.bf16.msra.mxu0 0
  %576 = vmatprep.subr.bf16.mxu0 0
  %577 = vmatpush1.bf16.msra.mxu0 0
  %578 = vmatprep.subr.bf16.mxu0 0
  %579 = vmatpush1.bf16.msra.mxu0 0
  %580 = vmatprep.subr.bf16.mxu0 0
  %581 = vmatpush1.bf16.msra.mxu0 0
  %582 = vmatprep.subr.bf16.mxu0 0
  %583 = vmatpush1.bf16.msra.mxu0 0
  %584 = vmatprep.subr.bf16.mxu0 0
  %585 = vmatpush1.bf16.msra.mxu0 0
  %586 = vmatprep.mubr.bf16.mxu0 0
  %587 = vmatmul.mubr.bf16.gmra.mrb[0].mxu0 %v499
  %v588 = vpop.f32.mrb[0].mxu0
  %v589 = vadd.f32 %v504, %v588
  %v590 = vpop.f32.mrb[0].mxu0
  %v591 = vpop.f32.mrb[0].mxu0
  %v592 = vadd.f32 %v504, %v591
  %v593 = vpop.f32.mrb[0].mxu0
  %594 = vdwg.mxu0
  %v595 = vmax.f32 %v589, 0.0
  %v596 = vmax.f32 %v592, 0.0
  %v597 = vpack.c.bf16 %v596, %v595
  %v599 = vlaneseq
  %v600 = vshrl.u32 %v599, 7
  %v601 = vsub.s32 0, %v600
  %v602 = vrot.slane %v453, %v601
  %v620 = vunpack.c.l.b16 %v434
  %v621 = vunpack.c.l.b16 %v435
  %v622 = vunpack.c.l.b16 %v436
  %v623 = vunpack.c.l.b16 %v437
  %v624 = vunpack.c.l.b16 %v438
  %v625 = vunpack.c.l.b16 %v439
  %v626 = vunpack.c.l.b16 %v440
  %v627 = vunpack.c.l.b16 %v441
  %v628 = vunpack.c.l.b16 %v442
  %v629 = vunpack.c.l.b16 %v443
  %v630 = vunpack.c.l.b16 %v444
  %v631 = vunpack.c.l.b16 %v445
  %v632 = vunpack.c.l.b16 %v446
  %v633 = vunpack.c.l.b16 %v447
  %v634 = vunpack.c.l.b16 %v448
  %v635 = vunpack.c.l.b16 %v449
  %v636 = vpack.c.b16 %v621, %v620
  %v637 = vpack.c.b16 %v623, %v622
  %v638 = vpack.c.b16 %v625, %v624
  %v639 = vpack.c.b16 %v627, %v626
  %v640 = vpack.c.b16 %v629, %v628
  %v641 = vpack.c.b16 %v631, %v630
  %v642 = vpack.c.b16 %v633, %v632
  %v643 = vpack.c.b16 %v635, %v634
  %652 = vmatprep.subr.bf16.mxu0 0
  %653 = vmatpush1.bf16.msra.mxu0 %v636
  %654 = vmatprep.subr.bf16.mxu0 0
  %655 = vmatpush1.bf16.msra.mxu0 %v637
  %656 = vmatprep.subr.bf16.mxu0 0
  %657 = vmatpush1.bf16.msra.mxu0 %v638
  %658 = vmatprep.subr.bf16.mxu0 0
  %659 = vmatpush1.bf16.msra.mxu0 %v639
  %660 = vmatprep.subr.bf16.mxu0 0
  %661 = vmatpush1.bf16.msra.mxu0 %v640
  %662 = vmatprep.subr.bf16.mxu0 0
  %663 = vmatpush1.bf16.msra.mxu0 %v641
  %664 = vmatprep.subr.bf16.mxu0 0
  %665 = vmatpush1.bf16.msra.mxu0 %v642
  %666 = vmatprep.subr.bf16.mxu0 0
  %667 = vmatpush1.bf16.msra.mxu0 %v643
  %668 = vmatprep.subr.bf16.mxu0 0
  %669 = vmatpush1.bf16.msra.mxu0 0
  %670 = vmatprep.subr.bf16.mxu0 0
  %671 = vmatpush1.bf16.msra.mxu0 0
  %672 = vmatprep.subr.bf16.mxu0 0
  %673 = vmatpush1.bf16.msra.mxu0 0
  %674 = vmatprep.subr.bf16.mxu0 0
  %675 = vmatpush1.bf16.msra.mxu0 0
  %676 = vmatprep.subr.bf16.mxu0 0
  %677 = vmatpush1.bf16.msra.mxu0 0
  %678 = vmatprep.subr.bf16.mxu0 0
  %679 = vmatpush1.bf16.msra.mxu0 0
  %680 = vmatprep.subr.bf16.mxu0 0
  %681 = vmatpush1.bf16.msra.mxu0 0
  %682 = vmatprep.subr.bf16.mxu0 0
  %683 = vmatpush1.bf16.msra.mxu0 0
  %684 = vmatprep.mubr.bf16.mxu0 0
  %685 = vmatmul.mubr.bf16.gmra.mrb[0].mxu0 %v597
  %v686 = vpop.f32.mrb[0].mxu0
  %v687 = vadd.f32 %v602, %v686
  %v688 = vpop.f32.mrb[0].mxu0
  %v689 = vpop.f32.mrb[0].mxu0
  %v690 = vadd.f32 %v602, %v689
  %v691 = vpop.f32.mrb[0].mxu0
  %692 = vdwg.mxu0
  %v693 = vmax.f32 %v687, 0.0
  %v694 = vmax.f32 %v690, 0.0
  %v695 = vadd.f32 %v693, %v694
  %v696 = vrot.slane %v695, 4
  %v697 = vadd.f32 %v695, %v696
  %v698 = vrot.slane %v697, 2
  %v699 = vadd.f32 %v697, %v698
  %v700 = vrot.slane %v699, 1
  %v701 = vadd.f32 %v699, %v700
  %v702 = vmul.f32 %v701, %v335
  %v703 = vsub.f32 %v693, %v702
  %v704 = vsub.f32 %v694, %v702
  %v705 = vmul.f32 %v703, %v703
  %v706 = vmul.f32 %v704, %v704
  %v707 = vadd.f32 %v705, %v706
  %v708 = vrot.slane %v707, 4
  %v709 = vadd.f32 %v707, %v708
  %v710 = vrot.slane %v709, 2
  %v711 = vadd.f32 %v709, %v710
  %v712 = vrot.slane %v711, 1
  %v713 = vadd.f32 %v711, %v712
  %v714 = vmul.f32 %v713, %v335
  %v715 = vadd.f32 %v714, 1e-05
  %v716 = vrsqrt.pop %v715
  %v717 = vmul.f32 %v703, %v716
  %v718 = vmul.f32 %v704, %v716
  %v720 = vlaneseq
  %v721 = vshrl.u32 %v720, 7
  %v722 = vsub.s32 0, %v721
  %v723 = vrot.slane %v455, %v722
  %v725 = vmul.f32 %v717, %v723
  %v726 = vmul.f32 %v718, %v723
  %v728 = vlaneseq
  %v729 = vshrl.u32 %v728, 7
  %v730 = vsub.s32 0, %v729
  %v731 = vrot.slane %v457, %v730
  %v733 = vadd.f32 %v725, %v731
  %v734 = vadd.f32 %v726, %v731
  %735 = vst [vmem:[%s9 + $0x8] sm:$0xff] %v733
  %736 = vst [vmem:[%s9 + $0x18] sm:$0xff] %v734
  %v737 = vpack.c.bf16 %v734, %v733
  %738 = vmatprep.subr.bf16.mxu0 0
  %739 = vmatpush1.bf16.msra.mxu0 %v737
  %740 = vmatprep.subr.bf16.mxu0 0
  %741 = vmatpush1.bf16.msra.mxu0 0
  %742 = vmatprep.subr.bf16.mxu0 0
  %743 = vmatpush1.bf16.msra.mxu0 0
  %744 = vmatprep.subr.bf16.mxu0 0
  %745 = vmatpush1.bf16.msra.mxu0 0
  %746 = vmatprep.subr.bf16.mxu0 0
  %747 = vmatpush1.bf16.msra.mxu0 0
  %748 = vmatprep.subr.bf16.mxu0 0
  %749 = vmatpush1.bf16.msra.mxu0 0
  %750 = vmatprep.subr.bf16.mxu0 0
  %751 = vmatpush1.bf16.msra.mxu0 0
  %752 = vmatprep.subr.bf16.mxu0 0
  %753 = vmatpush1.bf16.msra.mxu0 0
  %754 = vmatprep.subr.bf16.mxu0 0
  %755 = vmatpush1.bf16.msra.mxu0 0
  %756 = vmatprep.subr.bf16.mxu0 0
  %757 = vmatpush1.bf16.msra.mxu0 0
  %758 = vmatprep.subr.bf16.mxu0 0
  %759 = vmatpush1.bf16.msra.mxu0 0
  %760 = vmatprep.subr.bf16.mxu0 0
  %761 = vmatpush1.bf16.msra.mxu0 0
  %762 = vmatprep.subr.bf16.mxu0 0
  %763 = vmatpush1.bf16.msra.mxu0 0
  %764 = vmatprep.subr.bf16.mxu0 0
  %765 = vmatpush1.bf16.msra.mxu0 0
  %766 = vmatprep.subr.bf16.mxu0 0
  %767 = vmatpush1.bf16.msra.mxu0 0
  %768 = vmatprep.subr.bf16.mxu0 0
  %769 = vmatpush1.bf16.msra.mxu0 0
  %770 = vmatprep.mubr.bf16.mxu0 0
  %771 = vmatmul.mubr.bf16.gmra.mrb[0].mxu0 %v373
  %v772 = vpop.f32.mrb[0].mxu0
  %v773 = vadd.f32 0.0, %v772
  %v774 = vpop.f32.mrb[0].mxu0
  %v775 = vpop.f32.mrb[0].mxu0
  %v776 = vpop.f32.mrb[0].mxu0
  %777 = vdwg.mxu0
  %778 = vst [vmem:[%s10 + $0x2] sm:$0x3] %v773
  // Predicated region
  $region38: #{encoder_forward.1} parent=0 // pred_check
    _
  $region39: #{encoder_forward.1} parent=0 // pred_check_branch
    %780 = sbr.rel (0) target = $region41
  $region40: #{encoder_forward.1} parent=0 // pred_region
    _
  $region41: #{encoder_forward.1} parent=0 // pred_fallthru
    _
  // Predicated region
  $region42: #{encoder_forward.1} parent=0 // pred_check
    _
  $region43: #{encoder_forward.1} parent=0 // pred_check_branch
    %782 = sbr.rel (0) target = $region45
  $region44: #{encoder_forward.1} parent=0 // pred_region
    _
  $region45: #{encoder_forward.1} parent=0 // pred_fallthru
    _
  // Predicated region
  $region46: #{encoder_forward.1} parent=0 // pred_check
    _
  $region47: #{encoder_forward.1} parent=0 // pred_check_branch
    %784 = sbr.rel (0) target = $region49
  $region48: #{encoder_forward.1} parent=0 // pred_region
    _
  $region49: #{encoder_forward.1} parent=0 // pred_fallthru
    _
  // Predicated region
  $region50: #{encoder_forward.1} parent=0 // pred_check
    _
  $region51: #{encoder_forward.1} parent=0 // pred_check_branch
    %786 = sbr.rel (0) target = $region53
  $region52: #{encoder_forward.1} parent=0 // pred_region
    _
  $region53: #{encoder_forward.1} parent=0 // pred_fallthru
    _

</llo_original>
